<compile_context>
chip_gen: v6e
topology: v6e:2x2x1
jax: 0.10.0
libtpu: 0.0.40
codegen_flags: <defaults>
</compile_context>

<pallas_src>
import jax
import jax.numpy as jnp
from jax.experimental import pallas as pl
from jax.experimental.pallas import tpu as pltpu

INPUT_DIM = 128
HIDDEN_DIM = 64
OUTPUT_DIM = 64


def projection_head_kernel(x_ref, w1_ref, b1_ref, w2_ref, b2_ref, o_ref):
    # First linear: (tb, INPUT_DIM) @ (INPUT_DIM, HIDDEN_DIM) + (1, HIDDEN_DIM)
    h = jnp.dot(x_ref[...], w1_ref[...], preferred_element_type=jnp.float32)
    h = jnp.maximum(h + b1_ref[...], 0.0)  # bias + ReLU on the VPU
    # Second linear: (tb, HIDDEN_DIM) @ (HIDDEN_DIM, OUTPUT_DIM) + (1, OUTPUT_DIM)
    y = jnp.dot(h, w2_ref[...], preferred_element_type=jnp.float32)
    y = y + b2_ref[...]
    o_ref[...] = y.astype(o_ref.dtype)


def _pick_batch_tile(B, target=1024):
    """Pick the batch tile tb such that:
      - tb divides B,
      - tb is a multiple of 8 (f32 sublane packing rule for block shapes),
      - tb <= target rows (keeps double-buffered VMEM usage small, v7x-safe),
      - the grid has >= 2 steps whenever possible (megacore split on v7x).
    Falls back to tb = B (single full-array block) for tiny / non-multiple-of-8 batches.
    """
    if B <= 8 or B % 8 != 0:
        return B
    cap = min(target, B // 2)
    cap -= cap % 8
    for t in range(cap, 7, -8):
        if B % t == 0:
            return t
    return B


def projection_head(x, w1, b1, w2, b2, *, tb=None):
    B, D = x.shape
    assert D == INPUT_DIM
    if tb is None:
        tb = _pick_batch_tile(B)
    assert B % tb == 0, f"batch tile {tb} must divide B={B}"
    grid = (B // tb,)
    return pl.pallas_call(
        projection_head_kernel,
        out_shape=jax.ShapeDtypeStruct((B, OUTPUT_DIM), x.dtype),
        grid_spec=pltpu.PrefetchScalarGridSpec(
            num_scalar_prefetch=0,
            grid=grid,
            in_specs=[
                # x: tiled over the batch axis only
                pl.BlockSpec((tb, INPUT_DIM), lambda i: (i, 0)),
                # weights / biases: constant block index => DMA'd once, resident in VMEM
                pl.BlockSpec((INPUT_DIM, HIDDEN_DIM), lambda i: (0, 0)),
                pl.BlockSpec((1, HIDDEN_DIM), lambda i: (0, 0)),
                pl.BlockSpec((HIDDEN_DIM, OUTPUT_DIM), lambda i: (0, 0)),
                pl.BlockSpec((1, OUTPUT_DIM), lambda i: (0, 0)),
            ],
            out_specs=pl.BlockSpec((tb, OUTPUT_DIM), lambda i: (i, 0)),
        ),
        compiler_params=pltpu.CompilerParams(
            # Batch axis is embarrassingly parallel -> lets the runtime shard
            # grid steps across both TensorCores on v7x.
            dimension_semantics=("parallel",),
        ),
    )(x, w1, b1, w2, b2)


def init_params(key):
    # Deterministic synthetic init (PyTorch-style uniform bounds 1/sqrt(fan_in)).
    k1, k2, k3, k4 = jax.random.split(key, 4)
    bound1 = 1.0 / jnp.sqrt(INPUT_DIM)
    bound2 = 1.0 / jnp.sqrt(HIDDEN_DIM)
    w1 = jax.random.uniform(k1, (INPUT_DIM, HIDDEN_DIM), jnp.float32, -bound1, bound1)
    b1 = jax.random.uniform(k2, (1, HIDDEN_DIM), jnp.float32, -bound1, bound1)
    w2 = jax.random.uniform(k3, (HIDDEN_DIM, OUTPUT_DIM), jnp.float32, -bound2, bound2)
    b2 = jax.random.uniform(k4, (1, OUTPUT_DIM), jnp.float32, -bound2, bound2)
    return w1, b1, w2, b2


def reference(x, w1, b1, w2, b2):
    h = jnp.maximum(x @ w1 + b1, 0.0)
    return h @ w2 + b2


if __name__ == "__main__":
    key = jax.random.PRNGKey(0)
    kx, kp = jax.random.split(key)
    w1, b1, w2, b2 = init_params(kp)

    # Main check: B large enough that the picker produces a multi-step grid
    # (B=256 -> tb=128, grid=(2,)), still a small problem.
    B = 256
    x = jax.random.normal(kx, (B, INPUT_DIM), jnp.float32)
    out = jax.block_until_ready(projection_head(x, w1, b1, w2, b2))
    ref = reference(x, w1, b1, w2, b2)
    assert out.shape == (B, OUTPUT_DIM)
    assert jnp.allclose(out, ref, atol=2e-5, rtol=2e-5)

    # Also exercise the tiny-batch fallback path (single full-array block).
    x_small = jax.random.normal(kx, (8, INPUT_DIM), jnp.float32)
    out_small = jax.block_until_ready(projection_head(x_small, w1, b1, w2, b2))
    ref_small = reference(x_small, w1, b1, w2, b2)
    assert out_small.shape == (8, OUTPUT_DIM)
    assert jnp.allclose(out_small, ref_small, atol=2e-5, rtol=2e-5)

    print("KERNEL_OK")
</pallas_src>

<mosaic_0001>
module attributes {stable_mosaic.version = 11 : i64} {
  func.func @projection_head_kernel(%arg0: i32, %arg1: memref<128x128xf32, #tpu.memory_space<vmem>>, %arg2: memref<128x64xf32, #tpu.memory_space<vmem>>, %arg3: memref<1x64xf32, #tpu.memory_space<vmem>>, %arg4: memref<64x64xf32, #tpu.memory_space<vmem>>, %arg5: memref<1x64xf32, #tpu.memory_space<vmem>>, %arg6: memref<128x64xf32, #tpu.memory_space<vmem>>) attributes {dimension_semantics = [#tpu.dimension_semantics<parallel>], iteration_bounds = array<i64: 2>, scalar_prefetch = 0 : i64, scratch_operands = 0 : i64, tpu.core_type = #tpu.core_type<tc>, window_params = [{transform_indices = @transform_0, window_bounds = array<i64: 128, 128>}, {pipeline_mode = #tpu.pipeline_mode<synchronous>, transform_indices = @transform_1, window_bounds = array<i64: 128, 64>}, {pipeline_mode = #tpu.pipeline_mode<synchronous>, transform_indices = @transform_2, window_bounds = array<i64: 1, 64>}, {pipeline_mode = #tpu.pipeline_mode<synchronous>, transform_indices = @transform_3, window_bounds = array<i64: 64, 64>}, {pipeline_mode = #tpu.pipeline_mode<synchronous>, transform_indices = @transform_4, window_bounds = array<i64: 1, 64>}, {transform_indices = @transform_5, window_bounds = array<i64: 128, 64>}]} {
    %c0 = arith.constant 0 : index
    %c0_0 = arith.constant 0 : index
    %0 = vector.load %arg1[%c0, %c0_0] : memref<128x128xf32, #tpu.memory_space<vmem>>, vector<128x128xf32>
    %c0_1 = arith.constant 0 : index
    %c0_2 = arith.constant 0 : index
    %1 = vector.load %arg2[%c0_1, %c0_2] : memref<128x64xf32, #tpu.memory_space<vmem>>, vector<128x64xf32>
    %cst = arith.constant dense<0.000000e+00> : vector<128x64xf32>
    %2 = tpu.matmul %0, %1, %cst {dimension_numbers = #tpu.dot_dimension_numbers<[1], [0], [0], [1], [0, 0, 1, 1], [], []>} : vector<128x128xf32>, vector<128x64xf32>, vector<128x64xf32> -> vector<128x64xf32>
    %c0_3 = arith.constant 0 : index
    %c0_4 = arith.constant 0 : index
    %3 = vector.load %arg3[%c0_3, %c0_4] : memref<1x64xf32, #tpu.memory_space<vmem>>, vector<1x64xf32>
    %4 = vector.broadcast %3 : vector<1x64xf32> to vector<128x64xf32>
    %5 = arith.addf %2, %4 : vector<128x64xf32>
    %cst_5 = arith.constant 0.000000e+00 : f32
    %6 = vector.broadcast %cst_5 : f32 to vector<128x64xf32>
    %7 = arith.maximumf %5, %6 : vector<128x64xf32>
    %c0_6 = arith.constant 0 : index
    %c0_7 = arith.constant 0 : index
    %8 = vector.load %arg4[%c0_6, %c0_7] : memref<64x64xf32, #tpu.memory_space<vmem>>, vector<64x64xf32>
    %cst_8 = arith.constant dense<0.000000e+00> : vector<128x64xf32>
    %9 = tpu.matmul %7, %8, %cst_8 {dimension_numbers = #tpu.dot_dimension_numbers<[1], [0], [0], [1], [0, 0, 1, 1], [], []>} : vector<128x64xf32>, vector<64x64xf32>, vector<128x64xf32> -> vector<128x64xf32>
    %c0_9 = arith.constant 0 : index
    %c0_10 = arith.constant 0 : index
    %10 = vector.load %arg5[%c0_9, %c0_10] : memref<1x64xf32, #tpu.memory_space<vmem>>, vector<1x64xf32>
    %11 = vector.broadcast %10 : vector<1x64xf32> to vector<128x64xf32>
    %12 = arith.addf %9, %11 : vector<128x64xf32>
    %c0_11 = arith.constant 0 : index
    %c0_12 = arith.constant 0 : index
    %13 = vector.load %arg6[%c0_11, %c0_12] : memref<128x64xf32, #tpu.memory_space<vmem>>, vector<128x64xf32>
    tpu.vector_store %arg6[%c0_11, %c0_12], %12 {strides = array<i32>} : memref<128x64xf32, #tpu.memory_space<vmem>>, vector<128x64xf32>,
    return
  }
  func.func @transform_0(%arg0: i32) -> (i32, i32) {
    %c0_i32 = arith.constant 0 : i32
    %c0_i32_0 = arith.constant 0 : i32
    return %arg0, %c0_i32 : i32, i32
  }
  func.func @transform_1(%arg0: i32) -> (i32, i32) {
    %c0_i32 = arith.constant 0 : i32
    %c0_i32_0 = arith.constant 0 : i32
    %c0_i32_1 = arith.constant 0 : i32
    return %c0_i32, %c0_i32_0 : i32, i32
  }
  func.func @transform_2(%arg0: i32) -> (i32, i32) {
    %c0_i32 = arith.constant 0 : i32
    %c0_i32_0 = arith.constant 0 : i32
    %c0_i32_1 = arith.constant 0 : i32
    return %c0_i32, %c0_i32_0 : i32, i32
  }
  func.func @transform_3(%arg0: i32) -> (i32, i32) {
    %c0_i32 = arith.constant 0 : i32
    %c0_i32_0 = arith.constant 0 : i32
    %c0_i32_1 = arith.constant 0 : i32
    return %c0_i32, %c0_i32_0 : i32, i32
  }
  func.func @transform_4(%arg0: i32) -> (i32, i32) {
    %c0_i32 = arith.constant 0 : i32
    %c0_i32_0 = arith.constant 0 : i32
    %c0_i32_1 = arith.constant 0 : i32
    return %c0_i32, %c0_i32_0 : i32, i32
  }
  func.func @transform_5(%arg0: i32) -> (i32, i32) {
    %c0_i32 = arith.constant 0 : i32
    %c0_i32_0 = arith.constant 0 : i32
    return %arg0, %c0_i32 : i32, i32
  }
}

</mosaic_0001>

<llo_original>
// kernel: tpu_custom_call.1
$region0: #{tpu_custom_call.1}
  #allocation0 [shape = 'u32[]', space=smem, size = 0x4, offset = 0x4, fixed_abs, tag = 'smem constant byte address 0x4 - core index']
  #allocation1 [shape = 'u32[144,128]{1,0:T(1,128)}', space=vmem, size = 0x12000, scoped, tag = 'internal scratch']
  %s0 = inlined_call_operand.hbm [shape: f32[256,128], index: 0, kind: input, shape index: {}]
  %s1 = inlined_call_operand.vmem [shape: f32[128,64], index: 1, kind: input, shape index: {}]
  %s2 = inlined_call_operand.vmem [shape: f32[1,64], index: 2, kind: input, shape index: {}]
  %s3 = inlined_call_operand.vmem [shape: f32[64,64], index: 3, kind: input, shape index: {}]
  %s4 = inlined_call_operand.vmem [shape: f32[1,64], index: 4, kind: input, shape index: {}]
  %s5 = inlined_call_operand.vmem [shape: f32[256,64], index: 5, kind: output, shape index: {}]
  %s6 = sld [smem:[#allocation0]]
  $region57: #{tpu_custom_call.1} parent=0
    _
  %s8 = ssub.s32 1, %s6
  %s9 = scalar_select 0, %s8, %s6
  $region1: #{tpu_custom_call.1} parent=0
    #allocation2 [shape = 'u8[131072]{0}', space=vmem, size = 0x20000, scoped, tag = 'input window, operand 0']
    #allocation3 [shape = 's32[2]{0}', space=sflag, size = 0x8, scoped, tag = 'scoped memory for tpu_custom_call.1']
    %10 = vsyncpa [#allocation3], 0
    %s11 = scalar_lea.sflag [#allocation3], 1
    %12 = vsyncpa %s11, 0
    loop: start=0, step=1, limit=4
    $region2: #{tpu_custom_call.1} parent=1 // loop_pre_header
      _
    $region3: #{tpu_custom_call.1} parent=1 // loop_header
      %s14 = sphi 0, %s18
      %p15 = scmp.ge.s32.totalorder %s14, 4
      %s24 = sphi 0, %s26
      %s27 = sphi 0, %s24
      %s28 = sphi 0, %s27
      %s44 = sphi 0, %s28
      %s48 = sphi 0, %s48
      %s50 = sphi 0, %s48
      %s51 = sphi 0, %s50
      %s65 = sphi 0, %s51
      %s69 = sphi 0, %s69
      %s71 = sphi 0, %s69
      %s72 = sphi 0, %s71
      %s86 = sphi 0, %s72
      %s90 = sphi 0, %s90
      %s92 = sphi 0, %s90
      %s93 = sphi 0, %s92
      %s107 = sphi 0, %s93
      %s111 = sphi 0, %s111
      %s113 = sphi 0, %s111
      %s114 = sphi 0, %s113
      %s128 = sphi 0, %s114
      %s134 = sphi 0, %s136
      %s137 = sphi 0, %s134
      %s138 = sphi 0, %s137
      %s154 = sphi 0, %s138
    $region4: #{tpu_custom_call.1} parent=1 // loop_header_branch
      %17 = sbr.rel (%p15) target = $region8
    $region5: #{tpu_custom_call.1} parent=1 // loop_body
      %s19 = ssub.s32 %s14, 1
      %s20 = ssub.s32 %s14, 2
      %s21 = sadd.s32 %s14, 1
      %s22 = ssub.s32 %s14, %s21
      %p23 = scmp.eq.s32.totalorder %s22, 0
      %s25 = sadd.s32 %s24, 1
      %s26 = scalar_select %p23, %s24, %s25
      %p29 = pneg %p23
      %p30 = scmp.eq.s32.totalorder %s14, 1
      %p31 = por %p29, %p30
      %p32 = scmp.ne.s32.totalorder %s24, %s27
      %p33 = scmp.eq.s32.totalorder %s14, 0
      %p34 = por %p32, %p33
      %p35 = scmp.ne.s32.totalorder %s24, %s27
      %p36 = scmp.eq.s32.totalorder %s19, 1
      %p37 = por %p35, %p36
      %p38 = scmp.ne.s32.totalorder %s27, %s28
      %p39 = scmp.eq.s32.totalorder %s19, 0
      %p40 = por %p38, %p39
      %p41 = scmp.ne.s32.totalorder %s27, %s28
      %p42 = scmp.eq.s32.totalorder %s20, 1
      %p43 = por %p41, %p42
      %p45 = scmp.ne.s32.totalorder %s28, %s44
      %p46 = scmp.eq.s32.totalorder %s20, 0
      %p47 = por %p45, %p46
      %s49 = sadd.s32 %s48, 1
      %p52 = scmp.eq.s32.totalorder %s14, 1
      %p53 = scmp.ne.s32.totalorder %s48, %s50
      %p54 = scmp.eq.s32.totalorder %s14, 0
      %p55 = por %p53, %p54
      %p56 = scmp.ne.s32.totalorder %s48, %s50
      %p57 = scmp.eq.s32.totalorder %s19, 1
      %p58 = por %p56, %p57
      %p59 = scmp.ne.s32.totalorder %s50, %s51
      %p60 = scmp.eq.s32.totalorder %s19, 0
      %p61 = por %p59, %p60
      %p62 = scmp.ne.s32.totalorder %s50, %s51
      %p63 = scmp.eq.s32.totalorder %s20, 1
      %p64 = por %p62, %p63
      %p66 = scmp.ne.s32.totalorder %s51, %s65
      %p67 = scmp.eq.s32.totalorder %s20, 0
      %p68 = por %p66, %p67
      %s70 = sadd.s32 %s69, 1
      %p73 = scmp.eq.s32.totalorder %s14, 1
      %p74 = scmp.ne.s32.totalorder %s69, %s71
      %p75 = scmp.eq.s32.totalorder %s14, 0
      %p76 = por %p74, %p75
      %p77 = scmp.ne.s32.totalorder %s69, %s71
      %p78 = scmp.eq.s32.totalorder %s19, 1
      %p79 = por %p77, %p78
      %p80 = scmp.ne.s32.totalorder %s71, %s72
      %p81 = scmp.eq.s32.totalorder %s19, 0
      %p82 = por %p80, %p81
      %p83 = scmp.ne.s32.totalorder %s71, %s72
      %p84 = scmp.eq.s32.totalorder %s20, 1
      %p85 = por %p83, %p84
      %p87 = scmp.ne.s32.totalorder %s72, %s86
      %p88 = scmp.eq.s32.totalorder %s20, 0
      %p89 = por %p87, %p88
      %s91 = sadd.s32 %s90, 1
      %p94 = scmp.eq.s32.totalorder %s14, 1
      %p95 = scmp.ne.s32.totalorder %s90, %s92
      %p96 = scmp.eq.s32.totalorder %s14, 0
      %p97 = por %p95, %p96
      %p98 = scmp.ne.s32.totalorder %s90, %s92
      %p99 = scmp.eq.s32.totalorder %s19, 1
      %p100 = por %p98, %p99
      %p101 = scmp.ne.s32.totalorder %s92, %s93
      %p102 = scmp.eq.s32.totalorder %s19, 0
      %p103 = por %p101, %p102
      %p104 = scmp.ne.s32.totalorder %s92, %s93
      %p105 = scmp.eq.s32.totalorder %s20, 1
      %p106 = por %p104, %p105
      %p108 = scmp.ne.s32.totalorder %s93, %s107
      %p109 = scmp.eq.s32.totalorder %s20, 0
      %p110 = por %p108, %p109
      %s112 = sadd.s32 %s111, 1
      %p115 = scmp.eq.s32.totalorder %s14, 1
      %p116 = scmp.ne.s32.totalorder %s111, %s113
      %p117 = scmp.eq.s32.totalorder %s14, 0
      %p118 = por %p116, %p117
      %p119 = scmp.ne.s32.totalorder %s111, %s113
      %p120 = scmp.eq.s32.totalorder %s19, 1
      %p121 = por %p119, %p120
      %p122 = scmp.ne.s32.totalorder %s113, %s114
      %p123 = scmp.eq.s32.totalorder %s19, 0
      %p124 = por %p122, %p123
      %p125 = scmp.ne.s32.totalorder %s113, %s114
      %p126 = scmp.eq.s32.totalorder %s20, 1
      %p127 = por %p125, %p126
      %p129 = scmp.ne.s32.totalorder %s114, %s128
      %p130 = scmp.eq.s32.totalorder %s20, 0
      %p131 = por %p129, %p130
      %s132 = ssub.s32 %s14, %s21
      %p133 = scmp.eq.s32.totalorder %s132, 0
      %s135 = sadd.s32 %s134, 1
      %s136 = scalar_select %p133, %s134, %s135
      %p139 = pneg %p133
      %p140 = scmp.eq.s32.totalorder %s14, 1
      %p141 = por %p139, %p140
      %p142 = scmp.ne.s32.totalorder %s134, %s137
      %p143 = scmp.eq.s32.totalorder %s14, 0
      %p144 = por %p142, %p143
      %p145 = scmp.ne.s32.totalorder %s134, %s137
      %p146 = scmp.eq.s32.totalorder %s19, 1
      %p147 = por %p145, %p146
      %p148 = scmp.ne.s32.totalorder %s137, %s138
      %p149 = scmp.eq.s32.totalorder %s19, 0
      %p150 = por %p148, %p149
      %p151 = scmp.ne.s32.totalorder %s137, %s138
      %p152 = scmp.eq.s32.totalorder %s20, 1
      %p153 = por %p151, %p152
      %p155 = scmp.ne.s32.totalorder %s138, %s154
      %p156 = scmp.eq.s32.totalorder %s20, 0
      %p157 = por %p155, %p156
      %p158 = scmp.le.s32.totalorder 1, %s14
      %p159 = scmp.lt.s32.totalorder %s14, 3
      %p160 = pnand %p158, %p159
      %p161 = pneg %p160
      // Predicated region
      $region9: #{tpu_custom_call.1} parent=5 // pred_check
        _
      $region10: #{tpu_custom_call.1} parent=5 // pred_check_branch
        %163 = sbr.rel (%p160) target = $region12
      $region11: #{tpu_custom_call.1} parent=5 // pred_region
        %s164 = ssub.s32 %s14, 1
        // Predicated region
        $region13: #{tpu_custom_call.1} parent=11 // pred_check
          %p165 = pneg %p61
        $region14: #{tpu_custom_call.1} parent=11 // pred_check_branch
          %167 = sbr.rel (%p165) target = $region16
        $region15: #{tpu_custom_call.1} parent=11 // pred_region
          _
        $region16: #{tpu_custom_call.1} parent=11 // pred_fallthru
          _
        // Predicated region
        $region17: #{tpu_custom_call.1} parent=11 // pred_check
          %p168 = pneg %p82
        $region18: #{tpu_custom_call.1} parent=11 // pred_check_branch
          %170 = sbr.rel (%p168) target = $region20
        $region19: #{tpu_custom_call.1} parent=11 // pred_region
          _
        $region20: #{tpu_custom_call.1} parent=11 // pred_fallthru
          _
        // Predicated region
        $region21: #{tpu_custom_call.1} parent=11 // pred_check
          %p171 = pneg %p103
        $region22: #{tpu_custom_call.1} parent=11 // pred_check_branch
          %173 = sbr.rel (%p171) target = $region24
        $region23: #{tpu_custom_call.1} parent=11 // pred_region
          _
        $region24: #{tpu_custom_call.1} parent=11 // pred_fallthru
          _
        // Predicated region
        $region25: #{tpu_custom_call.1} parent=11 // pred_check
          %p174 = pneg %p124
        $region26: #{tpu_custom_call.1} parent=11 // pred_check_branch
          %176 = sbr.rel (%p174) target = $region28
        $region27: #{tpu_custom_call.1} parent=11 // pred_region
          _
        $region28: #{tpu_custom_call.1} parent=11 // pred_fallthru
          _
      $region12: #{tpu_custom_call.1} parent=5 // pred_fallthru
        _
      %p177 = scmp.lt.s32.totalorder %s14, 2
      // Predicated region
      $region29: #{tpu_custom_call.1} parent=5 // pred_check
        %p178 = pneg %p177
      $region30: #{tpu_custom_call.1} parent=5 // pred_check_branch
        %180 = sbr.rel (%p178) target = $region32
      $region31: #{tpu_custom_call.1} parent=5 // pred_region
        // Predicated region
        $region33: #{tpu_custom_call.1} parent=31 // pred_check
          %p181 = pneg %p34
        $region34: #{tpu_custom_call.1} parent=31 // pred_check_branch
          %183 = sbr.rel (%p181) target = $region36
        $region35: #{tpu_custom_call.1} parent=31 // pred_region
          %s184 = sand.u32 %s24, 1
          %s185 = scalar_lea.sflag [#allocation3], %s184
          %s186 = sand.u32 %s24, 1
          %s187 = smul.addr %s186, 128
          %s188 = scalar_lea.vmem [#allocation2], %s187
          %s189 = smul.u32 16, %s14
          %s191 = ssub.s32 2048, 2048
          %192 = vsyncadd %s185, %s191
          %s193 = smul.addr %s189, 128
          %s194 = scalar_lea.hbm %s0, %s193
          %s195 = sshll.u32 %s188, 4
          %s196 = int_to_ptr.vmem [resolvable:$true] %s195
          %201 = dma.hbm_to_vmem [thread:$0]  %s194, 2048, %s196, %s185, 128, 128, 8
        $region36: #{tpu_custom_call.1} parent=31 // pred_fallthru
          _
      $region32: #{tpu_custom_call.1} parent=5 // pred_fallthru
        _
      %p202 = scmp.le.s32.totalorder 1, %s14
      %p203 = scmp.lt.s32.totalorder %s14, 3
      %p204 = pnand %p202, %p203
      %p205 = pneg %p204
      // Predicated region
      $region37: #{tpu_custom_call.1} parent=5 // pred_check
        _
      $region38: #{tpu_custom_call.1} parent=5 // pred_check_branch
        %207 = sbr.rel (%p204) target = $region40
      $region39: #{tpu_custom_call.1} parent=5 // pred_region
        %s208 = ssub.s32 %s14, 1
        %s209 = sand.u32 %s27, 1
        %s210 = scalar_lea.sflag [#allocation3], %s209
        %s211 = sand.u32 %s27, 1
        %s212 = smul.addr %s211, 128
        %s213 = scalar_lea.vmem [#allocation2], %s212
        // Predicated region
        $region41: #{tpu_custom_call.1} parent=39 // pred_check
          %p214 = pneg %p40
        $region42: #{tpu_custom_call.1} parent=39 // pred_check_branch
          %216 = sbr.rel (%p214) target = $region44
        $region43: #{tpu_custom_call.1} parent=39 // pred_region
          %217 = dma.done %s210, 2048
        $region44: #{tpu_custom_call.1} parent=39 // pred_fallthru
          _
        %s218 = sand.u32 %s27, 1
        %s219 = scalar_lea.sflag [#allocation3], %s218
        %s220 = sand.u32 %s27, 1
        %s221 = smul.addr %s220, 128
        %s222 = scalar_lea.vmem [#allocation2], %s221
        %p223 = pneg %p40
        %p224 = pneg %p37
        %p225 = pneg %p61
        %p226 = pneg %p58
        %p227 = pneg %p82
        %p228 = pneg %p79
        %p229 = pneg %p103
        %p230 = pneg %p100
        %p231 = pneg %p124
        %p232 = pneg %p121
        %p233 = pneg %p150
        %p234 = pneg %p147
        %s235 = smul.u32 16, %s19
        %p236 = scmp.lt.s32.totalorder %s235, 31
        %s237 = scalar_select %p236, %s235, 31
        %s238 = smul.addr %s237, 8
        %s239 = scalar_lea.vmem %s5, %s238
        %s240 = smul.u32 16, %s19
        %s241 = smul.u32 16, %s19
        %p242 = scmp.lt.s32.totalorder %s241, 31
        %s243 = scalar_select %p242, %s241, 31
        %s244 = smul.addr %s243, 8
        %s245 = scalar_lea.vmem %s5, %s244
        %s246 = smul.u32 16, %s19
        %v247 = vld [vmem:[%s213] sm:$0xff]
        %v248 = vld [vmem:[%s213 + $0x8] sm:$0xff]
        %v249 = vld [vmem:[%s213 + $0x10] sm:$0xff]
        %v250 = vld [vmem:[%s213 + $0x18] sm:$0xff]
        %v251 = vld [vmem:[%s213 + $0x20] sm:$0xff]
        %v252 = vld [vmem:[%s213 + $0x28] sm:$0xff]
        %v253 = vld [vmem:[%s213 + $0x30] sm:$0xff]
        %v254 = vld [vmem:[%s213 + $0x38] sm:$0xff]
        %v255 = vld [vmem:[%s213 + $0x40] sm:$0xff]
        %v256 = vld [vmem:[%s213 + $0x48] sm:$0xff]
        %v257 = vld [vmem:[%s213 + $0x50] sm:$0xff]
        %v258 = vld [vmem:[%s213 + $0x58] sm:$0xff]
        %v259 = vld [vmem:[%s213 + $0x60] sm:$0xff]
        %v260 = vld [vmem:[%s213 + $0x68] sm:$0xff]
        %v261 = vld [vmem:[%s213 + $0x70] sm:$0xff]
        %v262 = vld [vmem:[%s213 + $0x78] sm:$0xff]
        %v263 = vld [vmem:[%s1] sm:$0xff]
        %v264 = vld [vmem:[%s1 + $0x8] sm:$0xff]
        %v265 = vld [vmem:[%s1 + $0x10] sm:$0xff]
        %v266 = vld [vmem:[%s1 + $0x18] sm:$0xff]
        %v267 = vld [vmem:[%s1 + $0x20] sm:$0xff]
        %v268 = vld [vmem:[%s1 + $0x28] sm:$0xff]
        %v269 = vld [vmem:[%s1 + $0x30] sm:$0xff]
        %v270 = vld [vmem:[%s1 + $0x38] sm:$0xff]
        %v271 = vld [vmem:[%s1 + $0x40] sm:$0xff]
        %v272 = vld [vmem:[%s1 + $0x48] sm:$0xff]
        %v273 = vld [vmem:[%s1 + $0x50] sm:$0xff]
        %v274 = vld [vmem:[%s1 + $0x58] sm:$0xff]
        %v275 = vld [vmem:[%s1 + $0x60] sm:$0xff]
        %v276 = vld [vmem:[%s1 + $0x68] sm:$0xff]
        %v277 = vld [vmem:[%s1 + $0x70] sm:$0xff]
        %v278 = vld [vmem:[%s1 + $0x78] sm:$0xff]
        %v279 = vld [vmem:[%s2] sm:$0x1]
        %v281 = vlaneseq
        %v282 = vshrl.u32 %v281, 7
        %v283 = vsub.s32 0, %v282
        %v284 = vrot.slane %v279, %v283
        %286 = vmatprep.subr.mxu0 0.0
        %287 = vmatpush1.msra.mxu0 %v278
        %288 = vmatprep.subr.mxu0 0.0
        %289 = vmatpush1.msra.mxu0 %v277
        %290 = vmatprep.subr.mxu0 0.0
        %291 = vmatpush1.msra.mxu0 %v276
        %292 = vmatprep.subr.mxu0 0.0
        %293 = vmatpush1.msra.mxu0 %v275
        %294 = vmatprep.subr.mxu0 0.0
        %295 = vmatpush1.msra.mxu0 %v274
        %296 = vmatprep.subr.mxu0 0.0
        %297 = vmatpush1.msra.mxu0 %v273
        %298 = vmatprep.subr.mxu0 0.0
        %299 = vmatpush1.msra.mxu0 %v272
        %300 = vmatprep.subr.mxu0 0.0
        %301 = vmatpush1.msra.mxu0 %v271
        %302 = vmatprep.subr.mxu0 0.0
        %303 = vmatpush1.msra.mxu0 %v270
        %304 = vmatprep.subr.mxu0 0.0
        %305 = vmatpush1.msra.mxu0 %v269
        %306 = vmatprep.subr.mxu0 0.0
        %307 = vmatpush1.msra.mxu0 %v268
        %308 = vmatprep.subr.mxu0 0.0
        %309 = vmatpush1.msra.mxu0 %v267
        %310 = vmatprep.subr.mxu0 0.0
        %311 = vmatpush1.msra.mxu0 %v266
        %312 = vmatprep.subr.mxu0 0.0
        %313 = vmatpush1.msra.mxu0 %v265
        %314 = vmatprep.subr.mxu0 0.0
        %315 = vmatpush1.msra.mxu0 %v264
        %316 = vmatprep.subr.mxu0 0.0
        %317 = vmatpush1.msra.mxu0 %v263
        %318 = vmatprep.subr.mxu0 0.0
        %319 = vmatpush2.msra.mxu0 0.0
        %320 = vmatprep.subr.mxu0 0.0
        %321 = vmatpush2.msra.mxu0 0.0
        %322 = vmatprep.subr.mxu0 0.0
        %323 = vmatpush2.msra.mxu0 0.0
        %324 = vmatprep.subr.mxu0 0.0
        %325 = vmatpush2.msra.mxu0 0.0
        %326 = vmatprep.subr.mxu0 0.0
        %327 = vmatpush2.msra.mxu0 0.0
        %328 = vmatprep.subr.mxu0 0.0
        %329 = vmatpush2.msra.mxu0 0.0
        %330 = vmatprep.subr.mxu0 0.0
        %331 = vmatpush2.msra.mxu0 0.0
        %332 = vmatprep.subr.mxu0 0.0
        %333 = vmatpush2.msra.mxu0 0.0
        %334 = vmatprep.subr.mxu0 0.0
        %335 = vmatpush2.msra.mxu0 0.0
        %336 = vmatprep.subr.mxu0 0.0
        %337 = vmatpush2.msra.mxu0 0.0
        %338 = vmatprep.subr.mxu0 0.0
        %339 = vmatpush2.msra.mxu0 0.0
        %340 = vmatprep.subr.mxu0 0.0
        %341 = vmatpush2.msra.mxu0 0.0
        %342 = vmatprep.subr.mxu0 0.0
        %343 = vmatpush2.msra.mxu0 0.0
        %344 = vmatprep.subr.mxu0 0.0
        %345 = vmatpush2.msra.mxu0 0.0
        %346 = vmatprep.subr.mxu0 0.0
        %347 = vmatpush2.msra.mxu0 0.0
        %348 = vmatprep.subr.mxu0 0.0
        %349 = vmatpush2.msra.mxu0 0.0
        %350 = vmatprep.mubr.f32.mxu0 0.0
        %351 = vmatmul.mubr.f32.gmra.mxu0 %v247
        %v352 = vpop.f32.mrf.mxu0
        %v353 = vadd.f32 %v284, %v352
        %v354 = vpop.f32.mrf.mxu0
        %355 = vmatprep.mubr.f32.mxu0 0.0
        %356 = vmatmul.mubr.f32.gmra.mxu0 %v248
        %v357 = vpop.f32.mrf.mxu0
        %v358 = vadd.f32 %v284, %v357
        %v359 = vpop.f32.mrf.mxu0
        %360 = vmatprep.mubr.f32.mxu0 0.0
        %361 = vmatmul.mubr.f32.gmra.mxu0 %v249
        %v362 = vpop.f32.mrf.mxu0
        %v363 = vadd.f32 %v284, %v362
        %v364 = vpop.f32.mrf.mxu0
        %365 = vmatprep.mubr.f32.mxu0 0.0
        %366 = vmatmul.mubr.f32.gmra.mxu0 %v250
        %v367 = vpop.f32.mrf.mxu0
        %v368 = vadd.f32 %v284, %v367
        %v369 = vpop.f32.mrf.mxu0
        %370 = vmatprep.mubr.f32.mxu0 0.0
        %371 = vmatmul.mubr.f32.gmra.mxu0 %v251
        %v372 = vpop.f32.mrf.mxu0
        %v373 = vadd.f32 %v284, %v372
        %v374 = vpop.f32.mrf.mxu0
        %375 = vmatprep.mubr.f32.mxu0 0.0
        %376 = vmatmul.mubr.f32.gmra.mxu0 %v252
        %v377 = vpop.f32.mrf.mxu0
        %v378 = vadd.f32 %v284, %v377
        %v379 = vpop.f32.mrf.mxu0
        %380 = vmatprep.mubr.f32.mxu0 0.0
        %381 = vmatmul.mubr.f32.gmra.mxu0 %v253
        %v382 = vpop.f32.mrf.mxu0
        %v383 = vadd.f32 %v284, %v382
        %v384 = vpop.f32.mrf.mxu0
        %385 = vmatprep.mubr.f32.mxu0 0.0
        %386 = vmatmul.mubr.f32.gmra.mxu0 %v254
        %v387 = vpop.f32.mrf.mxu0
        %v388 = vadd.f32 %v284, %v387
        %v389 = vpop.f32.mrf.mxu0
        %390 = vmatprep.mubr.f32.mxu0 0.0
        %391 = vmatmul.mubr.f32.gmra.mxu0 %v255
        %v392 = vpop.f32.mrf.mxu0
        %v393 = vadd.f32 %v284, %v392
        %v394 = vpop.f32.mrf.mxu0
        %395 = vmatprep.mubr.f32.mxu0 0.0
        %396 = vmatmul.mubr.f32.gmra.mxu0 %v256
        %v397 = vpop.f32.mrf.mxu0
        %v398 = vadd.f32 %v284, %v397
        %v399 = vpop.f32.mrf.mxu0
        %400 = vmatprep.mubr.f32.mxu0 0.0
        %401 = vmatmul.mubr.f32.gmra.mxu0 %v257
        %v402 = vpop.f32.mrf.mxu0
        %v403 = vadd.f32 %v284, %v402
        %v404 = vpop.f32.mrf.mxu0
        %405 = vmatprep.mubr.f32.mxu0 0.0
        %406 = vmatmul.mubr.f32.gmra.mxu0 %v258
        %v407 = vpop.f32.mrf.mxu0
        %v408 = vadd.f32 %v284, %v407
        %v409 = vpop.f32.mrf.mxu0
        %410 = vmatprep.mubr.f32.mxu0 0.0
        %411 = vmatmul.mubr.f32.gmra.mxu0 %v259
        %v412 = vpop.f32.mrf.mxu0
        %v413 = vadd.f32 %v284, %v412
        %v414 = vpop.f32.mrf.mxu0
        %415 = vmatprep.mubr.f32.mxu0 0.0
        %416 = vmatmul.mubr.f32.gmra.mxu0 %v260
        %v417 = vpop.f32.mrf.mxu0
        %v418 = vadd.f32 %v284, %v417
        %v419 = vpop.f32.mrf.mxu0
        %420 = vmatprep.mubr.f32.mxu0 0.0
        %421 = vmatmul.mubr.f32.gmra.mxu0 %v261
        %v422 = vpop.f32.mrf.mxu0
        %v423 = vadd.f32 %v284, %v422
        %v424 = vpop.f32.mrf.mxu0
        %425 = vmatprep.mubr.f32.mxu0 0.0
        %426 = vmatmul.mubr.f32.gmra.mxu0 %v262
        %v427 = vpop.f32.mrf.mxu0
        %v428 = vadd.f32 %v284, %v427
        %v429 = vpop.f32.mrf.mxu0
        %430 = vdwg.mxu0
        %v431 = vmax.f32 %v353, 0.0
        %v432 = vmax.f32 %v358, 0.0
        %v433 = vmax.f32 %v363, 0.0
        %v434 = vmax.f32 %v368, 0.0
        %v435 = vmax.f32 %v373, 0.0
        %v436 = vmax.f32 %v378, 0.0
        %v437 = vmax.f32 %v383, 0.0
        %v438 = vmax.f32 %v388, 0.0
        %v439 = vmax.f32 %v393, 0.0
        %v440 = vmax.f32 %v398, 0.0
        %v441 = vmax.f32 %v403, 0.0
        %v442 = vmax.f32 %v408, 0.0
        %v443 = vmax.f32 %v413, 0.0
        %v444 = vmax.f32 %v418, 0.0
        %v445 = vmax.f32 %v423, 0.0
        %v446 = vmax.f32 %v428, 0.0
        %v447 = vld [vmem:[%s3] sm:$0xff]
        %v448 = vld [vmem:[%s3 + $0x8] sm:$0xff]
        %v449 = vld [vmem:[%s3 + $0x10] sm:$0xff]
        %v450 = vld [vmem:[%s3 + $0x18] sm:$0xff]
        %v451 = vld [vmem:[%s3 + $0x20] sm:$0xff]
        %v452 = vld [vmem:[%s3 + $0x28] sm:$0xff]
        %v453 = vld [vmem:[%s3 + $0x30] sm:$0xff]
        %v454 = vld [vmem:[%s3 + $0x38] sm:$0xff]
        %v455 = vld [vmem:[%s4] sm:$0x1]
        %v457 = vlaneseq
        %v458 = vshrl.u32 %v457, 7
        %v459 = vsub.s32 0, %v458
        %v460 = vrot.slane %v455, %v459
        %vm462 = vcmask 523264
        %v464 = vsel %vm462, %v431, 0
        %v467 = vsel %vm462, %v432, 0
        %v470 = vsel %vm462, %v433, 0
        %v473 = vsel %vm462, %v434, 0
        %v476 = vsel %vm462, %v435, 0
        %v479 = vsel %vm462, %v436, 0
        %v482 = vsel %vm462, %v437, 0
        %v485 = vsel %vm462, %v438, 0
        %v488 = vsel %vm462, %v439, 0
        %v491 = vsel %vm462, %v440, 0
        %v494 = vsel %vm462, %v441, 0
        %v497 = vsel %vm462, %v442, 0
        %v500 = vsel %vm462, %v443, 0
        %v503 = vsel %vm462, %v444, 0
        %v506 = vsel %vm462, %v445, 0
        %v509 = vsel %vm462, %v446, 0
        %511 = vmatprep.subr.mxu0 0.0
        %512 = vmatpush1.msra.mxu0 0.0
        %513 = vmatprep.subr.mxu0 0.0
        %514 = vmatpush1.msra.mxu0 0.0
        %515 = vmatprep.subr.mxu0 0.0
        %516 = vmatpush1.msra.mxu0 0.0
        %517 = vmatprep.subr.mxu0 0.0
        %518 = vmatpush1.msra.mxu0 0.0
        %519 = vmatprep.subr.mxu0 0.0
        %520 = vmatpush1.msra.mxu0 0.0
        %521 = vmatprep.subr.mxu0 0.0
        %522 = vmatpush1.msra.mxu0 0.0
        %523 = vmatprep.subr.mxu0 0.0
        %524 = vmatpush1.msra.mxu0 0.0
        %525 = vmatprep.subr.mxu0 0.0
        %526 = vmatpush1.msra.mxu0 0.0
        %527 = vmatprep.subr.mxu0 0.0
        %528 = vmatpush1.msra.mxu0 %v454
        %529 = vmatprep.subr.mxu0 0.0
        %530 = vmatpush1.msra.mxu0 %v453
        %531 = vmatprep.subr.mxu0 0.0
        %532 = vmatpush1.msra.mxu0 %v452
        %533 = vmatprep.subr.mxu0 0.0
        %534 = vmatpush1.msra.mxu0 %v451
        %535 = vmatprep.subr.mxu0 0.0
        %536 = vmatpush1.msra.mxu0 %v450
        %537 = vmatprep.subr.mxu0 0.0
        %538 = vmatpush1.msra.mxu0 %v449
        %539 = vmatprep.subr.mxu0 0.0
        %540 = vmatpush1.msra.mxu0 %v448
        %541 = vmatprep.subr.mxu0 0.0
        %542 = vmatpush1.msra.mxu0 %v447
        %543 = vmatprep.subr.mxu0 0.0
        %544 = vmatpush2.msra.mxu0 0.0
        %545 = vmatprep.subr.mxu0 0.0
        %546 = vmatpush2.msra.mxu0 0.0
        %547 = vmatprep.subr.mxu0 0.0
        %548 = vmatpush2.msra.mxu0 0.0
        %549 = vmatprep.subr.mxu0 0.0
        %550 = vmatpush2.msra.mxu0 0.0
        %551 = vmatprep.subr.mxu0 0.0
        %552 = vmatpush2.msra.mxu0 0.0
        %553 = vmatprep.subr.mxu0 0.0
        %554 = vmatpush2.msra.mxu0 0.0
        %555 = vmatprep.subr.mxu0 0.0
        %556 = vmatpush2.msra.mxu0 0.0
        %557 = vmatprep.subr.mxu0 0.0
        %558 = vmatpush2.msra.mxu0 0.0
        %559 = vmatprep.subr.mxu0 0.0
        %560 = vmatpush2.msra.mxu0 0.0
        %561 = vmatprep.subr.mxu0 0.0
        %562 = vmatpush2.msra.mxu0 0.0
        %563 = vmatprep.subr.mxu0 0.0
        %564 = vmatpush2.msra.mxu0 0.0
        %565 = vmatprep.subr.mxu0 0.0
        %566 = vmatpush2.msra.mxu0 0.0
        %567 = vmatprep.subr.mxu0 0.0
        %568 = vmatpush2.msra.mxu0 0.0
        %569 = vmatprep.subr.mxu0 0.0
        %570 = vmatpush2.msra.mxu0 0.0
        %571 = vmatprep.subr.mxu0 0.0
        %572 = vmatpush2.msra.mxu0 0.0
        %573 = vmatprep.subr.mxu0 0.0
        %574 = vmatpush2.msra.mxu0 0.0
        %575 = vmatprep.mubr.f32.mxu0 0.0
        %576 = vmatmul.mubr.f32.gmra.mxu0 %v464
        %v577 = vpop.f32.mrf.mxu0
        %v578 = vadd.f32 %v460, %v577
        %v579 = vpop.f32.mrf.mxu0
        %580 = vmatprep.mubr.f32.mxu0 0.0
        %581 = vmatmul.mubr.f32.gmra.mxu0 %v467
        %v582 = vpop.f32.mrf.mxu0
        %v583 = vadd.f32 %v460, %v582
        %v584 = vpop.f32.mrf.mxu0
        %585 = vmatprep.mubr.f32.mxu0 0.0
        %586 = vmatmul.mubr.f32.gmra.mxu0 %v470
        %v587 = vpop.f32.mrf.mxu0
        %v588 = vadd.f32 %v460, %v587
        %v589 = vpop.f32.mrf.mxu0
        %590 = vmatprep.mubr.f32.mxu0 0.0
        %591 = vmatmul.mubr.f32.gmra.mxu0 %v473
        %v592 = vpop.f32.mrf.mxu0
        %v593 = vadd.f32 %v460, %v592
        %v594 = vpop.f32.mrf.mxu0
        %595 = vmatprep.mubr.f32.mxu0 0.0
        %596 = vmatmul.mubr.f32.gmra.mxu0 %v476
        %v597 = vpop.f32.mrf.mxu0
        %v598 = vadd.f32 %v460, %v597
        %v599 = vpop.f32.mrf.mxu0
        %600 = vmatprep.mubr.f32.mxu0 0.0
        %601 = vmatmul.mubr.f32.gmra.mxu0 %v479
        %v602 = vpop.f32.mrf.mxu0
        %v603 = vadd.f32 %v460, %v602
        %v604 = vpop.f32.mrf.mxu0
        %605 = vmatprep.mubr.f32.mxu0 0.0
        %606 = vmatmul.mubr.f32.gmra.mxu0 %v482
        %v607 = vpop.f32.mrf.mxu0
        %v608 = vadd.f32 %v460, %v607
        %v609 = vpop.f32.mrf.mxu0
        %610 = vmatprep.mubr.f32.mxu0 0.0
        %611 = vmatmul.mubr.f32.gmra.mxu0 %v485
        %v612 = vpop.f32.mrf.mxu0
        %v613 = vadd.f32 %v460, %v612
        %v614 = vpop.f32.mrf.mxu0
        %615 = vmatprep.mubr.f32.mxu0 0.0
        %616 = vmatmul.mubr.f32.gmra.mxu0 %v488
        %v617 = vpop.f32.mrf.mxu0
        %v618 = vadd.f32 %v460, %v617
        %v619 = vpop.f32.mrf.mxu0
        %620 = vmatprep.mubr.f32.mxu0 0.0
        %621 = vmatmul.mubr.f32.gmra.mxu0 %v491
        %v622 = vpop.f32.mrf.mxu0
        %v623 = vadd.f32 %v460, %v622
        %v624 = vpop.f32.mrf.mxu0
        %625 = vmatprep.mubr.f32.mxu0 0.0
        %626 = vmatmul.mubr.f32.gmra.mxu0 %v494
        %v627 = vpop.f32.mrf.mxu0
        %v628 = vadd.f32 %v460, %v627
        %v629 = vpop.f32.mrf.mxu0
        %630 = vmatprep.mubr.f32.mxu0 0.0
        %631 = vmatmul.mubr.f32.gmra.mxu0 %v497
        %v632 = vpop.f32.mrf.mxu0
        %v633 = vadd.f32 %v460, %v632
        %v634 = vpop.f32.mrf.mxu0
        %635 = vmatprep.mubr.f32.mxu0 0.0
        %636 = vmatmul.mubr.f32.gmra.mxu0 %v500
        %v637 = vpop.f32.mrf.mxu0
        %v638 = vadd.f32 %v460, %v637
        %v639 = vpop.f32.mrf.mxu0
        %640 = vmatprep.mubr.f32.mxu0 0.0
        %641 = vmatmul.mubr.f32.gmra.mxu0 %v503
        %v642 = vpop.f32.mrf.mxu0
        %v643 = vadd.f32 %v460, %v642
        %v644 = vpop.f32.mrf.mxu0
        %645 = vmatprep.mubr.f32.mxu0 0.0
        %646 = vmatmul.mubr.f32.gmra.mxu0 %v506
        %v647 = vpop.f32.mrf.mxu0
        %v648 = vadd.f32 %v460, %v647
        %v649 = vpop.f32.mrf.mxu0
        %650 = vmatprep.mubr.f32.mxu0 0.0
        %651 = vmatmul.mubr.f32.gmra.mxu0 %v509
        %v652 = vpop.f32.mrf.mxu0
        %v653 = vadd.f32 %v460, %v652
        %v654 = vpop.f32.mrf.mxu0
        %655 = vdwg.mxu0
        %656 = vst.msk [vmem:[%s245] sm:$0xff] %vm462, %v578
        %657 = vst.msk [vmem:[%s245 + $0x8] sm:$0xff] %vm462, %v583
        %658 = vst.msk [vmem:[%s245 + $0x10] sm:$0xff] %vm462, %v588
        %659 = vst.msk [vmem:[%s245 + $0x18] sm:$0xff] %vm462, %v593
        %660 = vst.msk [vmem:[%s245 + $0x20] sm:$0xff] %vm462, %v598
        %661 = vst.msk [vmem:[%s245 + $0x28] sm:$0xff] %vm462, %v603
        %662 = vst.msk [vmem:[%s245 + $0x30] sm:$0xff] %vm462, %v608
        %663 = vst.msk [vmem:[%s245 + $0x38] sm:$0xff] %vm462, %v613
        %664 = vst.msk [vmem:[%s245 + $0x40] sm:$0xff] %vm462, %v618
        %665 = vst.msk [vmem:[%s245 + $0x48] sm:$0xff] %vm462, %v623
        %666 = vst.msk [vmem:[%s245 + $0x50] sm:$0xff] %vm462, %v628
        %667 = vst.msk [vmem:[%s245 + $0x58] sm:$0xff] %vm462, %v633
        %668 = vst.msk [vmem:[%s245 + $0x60] sm:$0xff] %vm462, %v638
        %669 = vst.msk [vmem:[%s245 + $0x68] sm:$0xff] %vm462, %v643
        %670 = vst.msk [vmem:[%s245 + $0x70] sm:$0xff] %vm462, %v648
        %671 = vst.msk [vmem:[%s245 + $0x78] sm:$0xff] %vm462, %v653
        %s672 = smul.u32 16, %s19
        %p673 = scmp.lt.s32.totalorder %s672, 31
        %s674 = scalar_select %p673, %s672, 31
        %s675 = smul.addr %s674, 8
        %s676 = scalar_lea.vmem %s5, %s675
        // Predicated region
        $region45: #{tpu_custom_call.1} parent=39 // pred_check
          %p677 = pneg %p147
        $region46: #{tpu_custom_call.1} parent=39 // pred_check_branch
          %679 = sbr.rel (%p677) target = $region48
        $region47: #{tpu_custom_call.1} parent=39 // pred_region
          %s680 = smul.u32 16, %s19
        $region48: #{tpu_custom_call.1} parent=39 // pred_fallthru
          _
      $region40: #{tpu_custom_call.1} parent=5 // pred_fallthru
        _
      %p681 = scmp.le.s32.totalorder 2, %s14
      // Predicated region
      $region49: #{tpu_custom_call.1} parent=5 // pred_check
        %p682 = pneg %p681
      $region50: #{tpu_custom_call.1} parent=5 // pred_check_branch
        %684 = sbr.rel (%p682) target = $region52
      $region51: #{tpu_custom_call.1} parent=5 // pred_region
        %s685 = ssub.s32 %s14, 2
        // Predicated region
        $region53: #{tpu_custom_call.1} parent=51 // pred_check
          %p686 = pneg %p153
        $region54: #{tpu_custom_call.1} parent=51 // pred_check_branch
          %688 = sbr.rel (%p686) target = $region56
        $region55: #{tpu_custom_call.1} parent=51 // pred_region
          %s689 = smul.u32 16, %s20
          %p690 = scmp.lt.s32.totalorder %s689, 31
          %s691 = scalar_select %p690, %s689, 31
          %s692 = smul.addr %s691, 8
          %s693 = scalar_lea.vmem %s5, %s692
        $region56: #{tpu_custom_call.1} parent=51 // pred_fallthru
          _
      $region52: #{tpu_custom_call.1} parent=5 // pred_fallthru
        _
    $region6: #{tpu_custom_call.1} parent=1 // loop_footer
      %s18 = sadd.s32 1, %s14
    $region7: #{tpu_custom_call.1} parent=1 // loop_footer_branch
      %13 = sbr.rel target = $region3
    $region8: #{tpu_custom_call.1} parent=1 // loop_exit
      _
    %694 = vsyncpa [#allocation3], 1
    %s695 = scalar_lea.sflag [#allocation3], 1
    %696 = vsyncpa %s695, 1

</llo_original>
